<compile_context>
chip_gen: v7x
topology: tpu7x:2x2x1
jax: 0.10.0
libtpu: 0.0.40
codegen_flags: <defaults>
</compile_context>

<pallas_src>
import jax
import jax.numpy as jnp
from jax.experimental import pallas as pl
from jax.experimental.pallas import tpu as pltpu


def _round_up(x, m):
    return ((x + m - 1) // m) * m


def _lora_kernel(x_ref, wd_ref, wu_ref, o_ref):
    # x_ref : (tm, in_features)
    # wd_ref: (in_features, rank)      == down.weight.T
    # wu_ref: (rank, out_features)     == up.weight.T
    # o_ref : (tm, out_features)
    h = jnp.dot(x_ref[...], wd_ref[...], preferred_element_type=jnp.float32)
    y = jnp.dot(h.astype(wu_ref.dtype), wu_ref[...],
                preferred_element_type=jnp.float32)
    o_ref[...] = y.astype(o_ref.dtype)


def lora_linear(hidden_states, w_down, w_up, *, block_m=256):
    """Pallas implementation of LoRALinearLayer.forward.

    hidden_states : (..., in_features)
    w_down        : (rank, in_features)   -- nn.Linear(in, rank).weight
    w_up          : (out_features, rank)  -- nn.Linear(rank, out).weight
    """
    orig_dtype = hidden_states.dtype
    dtype = w_down.dtype

    in_features = hidden_states.shape[-1]
    rank, in_w = w_down.shape
    out_features, rank_u = w_up.shape
    assert in_w == in_features and rank_u == rank
    assert rank <= min(in_features, out_features), "LoRA rank too large"

    lead = hidden_states.shape[:-1]
    M = 1
    for d in lead:
        M *= d

    # Flatten all leading dims; compute in the weight dtype (module semantics).
    x2d = hidden_states.reshape(M, in_features).astype(dtype)

    # Row tiling: tiles are a multiple of 8 sublanes; pad M so the grid divides.
    tm = min(block_m, _round_up(max(M, 1), 8))
    M_pad = _round_up(max(M, 1), tm)
    if M_pad != M:
        x2d = jnp.pad(x2d, ((0, M_pad - M), (0, 0)))

    wd_t = jnp.transpose(w_down)   # (in_features, rank)
    wu_t = jnp.transpose(w_up)     # (rank, out_features)

    out = pl.pallas_call(
        _lora_kernel,
        out_shape=jax.ShapeDtypeStruct((M_pad, out_features), dtype),
        grid_spec=pltpu.PrefetchScalarGridSpec(
            num_scalar_prefetch=0,
            grid=(M_pad // tm,),
            in_specs=[
                pl.BlockSpec((tm, in_features), lambda i: (i, 0)),
                pl.BlockSpec((in_features, rank), lambda i: (0, 0)),
                pl.BlockSpec((rank, out_features), lambda i: (0, 0)),
            ],
            out_specs=pl.BlockSpec((tm, out_features), lambda i: (i, 0)),
        ),
        compiler_params=pltpu.CompilerParams(
            dimension_semantics=("parallel",)),
    )(x2d, wd_t, wu_t)

    out = out[:M].reshape(*lead, out_features)
    return out.astype(orig_dtype)


def _reference(hidden_states, w_down, w_up):
    """Pure-JAX reference matching the PyTorch module."""
    orig_dtype = hidden_states.dtype
    dtype = w_down.dtype
    h = jnp.dot(hidden_states.astype(dtype), w_down.T)
    y = jnp.dot(h, w_up.T)
    return y.astype(orig_dtype)


if __name__ == "__main__":
    key = jax.random.PRNGKey(0)
    kx, kd, ku = jax.random.split(key, 3)

    # Small shapes consistent with the module: (batch, seq, hidden) tokens.
    batch, seq, in_features = 2, 8, 32
    rank, out_features = 4, 32

    x = jax.random.normal(kx, (batch, seq, in_features), jnp.float32)

    # module __init__: down ~ Normal(std=1/rank), up = zeros
    w_down = jax.random.normal(kd, (rank, in_features), jnp.float32) * (1.0 / rank)
    w_up_zero = jnp.zeros((out_features, rank), jnp.float32)

    out = lora_linear(x, w_down, w_up_zero)
    jax.block_until_ready(out)
    assert out.shape == (batch, seq, out_features)
    assert out.dtype == x.dtype

    # Correctness vs the pure-JAX reference, both with the module init (zero up)
    # and with random up weights so the fused math is actually exercised.
    w_up_rand = jax.random.normal(ku, (out_features, rank), jnp.float32)
    for wu in (w_up_zero, w_up_rand):
        got = lora_linear(x, w_down, wu)
        want = _reference(x, w_down, wu)
        assert jnp.allclose(got, want, atol=1e-5, rtol=1e-5), "mismatch vs reference"

    # Also exercise a case where M is not a multiple of the row tile and >1 grid step.
    x_big = jax.random.normal(kx, (3, 47, in_features), jnp.float32)
    got = lora_linear(x_big, w_down, w_up_rand, block_m=64)
    want = _reference(x_big, w_down, w_up_rand)
    assert jnp.allclose(got, want, atol=1e-5, rtol=1e-5), "mismatch (padded M)"

    print("KERNEL_OK")
</pallas_src>

<mosaic_0001>
module attributes {stable_mosaic.version = 11 : i64} {
  func.func @_lora_kernel(%arg0: i32, %arg1: memref<16x32xf32, #tpu.memory_space<vmem>>, %arg2: memref<32x4xf32, #tpu.memory_space<vmem>>, %arg3: memref<4x32xf32, #tpu.memory_space<vmem>>, %arg4: memref<16x32xf32, #tpu.memory_space<vmem>>) attributes {dimension_semantics = [#tpu.dimension_semantics<parallel>], iteration_bounds = array<i64: 1>, scalar_prefetch = 0 : i64, scratch_operands = 0 : i64, tpu.core_type = #tpu.core_type<tc>, window_params = [{transform_indices = @transform_0, window_bounds = array<i64: 16, 32>}, {pipeline_mode = #tpu.pipeline_mode<synchronous>, transform_indices = @transform_1, window_bounds = array<i64: 32, 4>}, {pipeline_mode = #tpu.pipeline_mode<synchronous>, transform_indices = @transform_2, window_bounds = array<i64: 4, 32>}, {transform_indices = @transform_3, window_bounds = array<i64: 16, 32>}]} {
    %c0 = arith.constant 0 : index
    %c0_0 = arith.constant 0 : index
    %0 = vector.load %arg1[%c0, %c0_0] : memref<16x32xf32, #tpu.memory_space<vmem>>, vector<16x32xf32>
    %c0_1 = arith.constant 0 : index
    %c0_2 = arith.constant 0 : index
    %1 = vector.load %arg2[%c0_1, %c0_2] : memref<32x4xf32, #tpu.memory_space<vmem>>, vector<32x4xf32>
    %cst = arith.constant dense<0.000000e+00> : vector<16x4xf32>
    %2 = tpu.matmul %0, %1, %cst {dimension_numbers = #tpu.dot_dimension_numbers<[1], [0], [0], [1], [0, 0, 1, 1], [], []>} : vector<16x32xf32>, vector<32x4xf32>, vector<16x4xf32> -> vector<16x4xf32>
    %c0_3 = arith.constant 0 : index
    %c0_4 = arith.constant 0 : index
    %3 = vector.load %arg3[%c0_3, %c0_4] : memref<4x32xf32, #tpu.memory_space<vmem>>, vector<4x32xf32>
    %cst_5 = arith.constant dense<0.000000e+00> : vector<16x32xf32>
    %4 = tpu.matmul %2, %3, %cst_5 {dimension_numbers = #tpu.dot_dimension_numbers<[1], [0], [0], [1], [0, 0, 1, 1], [], []>} : vector<16x4xf32>, vector<4x32xf32>, vector<16x32xf32> -> vector<16x32xf32>
    %c0_6 = arith.constant 0 : index
    %c0_7 = arith.constant 0 : index
    %5 = vector.load %arg4[%c0_6, %c0_7] : memref<16x32xf32, #tpu.memory_space<vmem>>, vector<16x32xf32>
    tpu.vector_store %arg4[%c0_6, %c0_7], %4 {strides = array<i32>} : memref<16x32xf32, #tpu.memory_space<vmem>>, vector<16x32xf32>,
    return
  }
  func.func @transform_0(%arg0: i32) -> (i32, i32) {
    %c0_i32 = arith.constant 0 : i32
    %c0_i32_0 = arith.constant 0 : i32
    return %arg0, %c0_i32 : i32, i32
  }
  func.func @transform_1(%arg0: i32) -> (i32, i32) {
    %c0_i32 = arith.constant 0 : i32
    %c0_i32_0 = arith.constant 0 : i32
    %c0_i32_1 = arith.constant 0 : i32
    return %c0_i32, %c0_i32_0 : i32, i32
  }
  func.func @transform_2(%arg0: i32) -> (i32, i32) {
    %c0_i32 = arith.constant 0 : i32
    %c0_i32_0 = arith.constant 0 : i32
    %c0_i32_1 = arith.constant 0 : i32
    return %c0_i32, %c0_i32_0 : i32, i32
  }
  func.func @transform_3(%arg0: i32) -> (i32, i32) {
    %c0_i32 = arith.constant 0 : i32
    %c0_i32_0 = arith.constant 0 : i32
    return %arg0, %c0_i32 : i32, i32
  }
}

</mosaic_0001>

<llo_original>
// kernel: tpu_custom_call.1
$region0: #{tpu_custom_call.1}
  #allocation0 [shape = 'u32[]', space=smem, size = 0x4, offset = 0x4, fixed_abs, tag = 'smem constant byte address 0x4 - core index']
  #allocation1 [shape = 'u32[144,128]{1,0:T(1,128)}', space=vmem, size = 0x12000, scoped, tag = 'internal scratch']
  %s0 = inlined_call_operand.vmem [shape: f32[16,32], index: 0, kind: input, shape index: {}]
  %s1 = inlined_call_operand.vmem [shape: f32[32,4], index: 1, kind: input, shape index: {}]
  %s2 = inlined_call_operand.vmem [shape: f32[4,32], index: 2, kind: input, shape index: {}]
  %s3 = inlined_call_operand.hbm [shape: f32[16,32], index: 3, kind: output, shape index: {}]
  %s4 = sld [smem:[#allocation0]]
  $region22: #{tpu_custom_call.1} parent=0
    _
  %s6 = ssub.s32 1, %s4
  %s7 = scalar_select 0, %s6, %s4
  $region1: #{tpu_custom_call.1} parent=0
    #allocation2 [shape = 'u8[8192]{0}', space=vmem, size = 0x2000, scoped, tag = 'output window, operand 0, single buffered']
    #allocation3 [shape = 's32[1]{0}', space=sflag, size = 0x4, scoped, tag = 'scoped memory for tpu_custom_call.1']
    %8 = vsyncpa [#allocation3], 0
    // Predicated region
    $region2: #{tpu_custom_call.1} parent=1 // pred_check
      _
    $region3: #{tpu_custom_call.1} parent=1 // pred_check_branch
      %10 = sbr.rel (0) target = $region5
    $region4: #{tpu_custom_call.1} parent=1 // pred_region
      _
    $region5: #{tpu_custom_call.1} parent=1 // pred_fallthru
      _
    // Predicated region
    $region6: #{tpu_custom_call.1} parent=1 // pred_check
      _
    $region7: #{tpu_custom_call.1} parent=1 // pred_check_branch
      %12 = sbr.rel (0) target = $region9
    $region8: #{tpu_custom_call.1} parent=1 // pred_region
      _
    $region9: #{tpu_custom_call.1} parent=1 // pred_fallthru
      _
    // Predicated region
    $region10: #{tpu_custom_call.1} parent=1 // pred_check
      _
    $region11: #{tpu_custom_call.1} parent=1 // pred_check_branch
      %14 = sbr.rel (0) target = $region13
    $region12: #{tpu_custom_call.1} parent=1 // pred_region
      _
    $region13: #{tpu_custom_call.1} parent=1 // pred_fallthru
      _
    %v15 = vld [vmem:[%s0] sm:$0xff]
    %v16 = vld [vmem:[%s0 + $0x8] sm:$0xff]
    %v17 = vld [vmem:[%s1] sm:$0xff]
    %v18 = vld [vmem:[%s1 + $0x8] sm:$0xff]
    %v19 = vld [vmem:[%s1 + $0x10] sm:$0xff]
    %v20 = vld [vmem:[%s1 + $0x18] sm:$0xff]
    %vm21 = vcmask 261120
    %v23 = vsel %vm21, %v15, 0
    %v26 = vsel %vm21, %v16, 0
    %28 = vmatprep.subr.mxu0 0.0
    %29 = vmatpush1.msra.mxu0 %v17
    %30 = vmatprep.subr.mxu0 0.0
    %31 = vmatpush1.msra.mxu0 %v18
    %32 = vmatprep.subr.mxu0 0.0
    %33 = vmatpush1.msra.mxu0 %v19
    %34 = vmatprep.subr.mxu0 0.0
    %35 = vmatpush1.msra.mxu0 %v20
    %36 = vmatprep.subr.mxu0 0.0
    %37 = vmatpush1.msra.mxu0 0.0
    %38 = vmatprep.subr.mxu0 0.0
    %39 = vmatpush1.msra.mxu0 0.0
    %40 = vmatprep.subr.mxu0 0.0
    %41 = vmatpush1.msra.mxu0 0.0
    %42 = vmatprep.subr.mxu0 0.0
    %43 = vmatpush1.msra.mxu0 0.0
    %44 = vmatprep.subr.mxu0 0.0
    %45 = vmatpush1.msra.mxu0 0.0
    %46 = vmatprep.subr.mxu0 0.0
    %47 = vmatpush1.msra.mxu0 0.0
    %48 = vmatprep.subr.mxu0 0.0
    %49 = vmatpush1.msra.mxu0 0.0
    %50 = vmatprep.subr.mxu0 0.0
    %51 = vmatpush1.msra.mxu0 0.0
    %52 = vmatprep.subr.mxu0 0.0
    %53 = vmatpush1.msra.mxu0 0.0
    %54 = vmatprep.subr.mxu0 0.0
    %55 = vmatpush1.msra.mxu0 0.0
    %56 = vmatprep.subr.mxu0 0.0
    %57 = vmatpush1.msra.mxu0 0.0
    %58 = vmatprep.subr.mxu0 0.0
    %59 = vmatpush1.msra.mxu0 0.0
    %60 = vmatprep.subr.mxu0 0.0
    %61 = vmatpush1.msra.mxu0 0.0
    %62 = vmatprep.subr.mxu0 0.0
    %63 = vmatpush1.msra.mxu0 0.0
    %64 = vmatprep.subr.mxu0 0.0
    %65 = vmatpush1.msra.mxu0 0.0
    %66 = vmatprep.subr.mxu0 0.0
    %67 = vmatpush1.msra.mxu0 0.0
    %68 = vmatprep.subr.mxu0 0.0
    %69 = vmatpush1.msra.mxu0 0.0
    %70 = vmatprep.subr.mxu0 0.0
    %71 = vmatpush1.msra.mxu0 0.0
    %72 = vmatprep.subr.mxu0 0.0
    %73 = vmatpush1.msra.mxu0 0.0
    %74 = vmatprep.subr.mxu0 0.0
    %75 = vmatpush1.msra.mxu0 0.0
    %76 = vmatprep.subr.mxu0 0.0
    %77 = vmatpush1.msra.mxu0 0.0
    %78 = vmatprep.subr.mxu0 0.0
    %79 = vmatpush1.msra.mxu0 0.0
    %80 = vmatprep.subr.mxu0 0.0
    %81 = vmatpush1.msra.mxu0 0.0
    %82 = vmatprep.subr.mxu0 0.0
    %83 = vmatpush1.msra.mxu0 0.0
    %84 = vmatprep.subr.mxu0 0.0
    %85 = vmatpush1.msra.mxu0 0.0
    %86 = vmatprep.subr.mxu0 0.0
    %87 = vmatpush1.msra.mxu0 0.0
    %88 = vmatprep.subr.mxu0 0.0
    %89 = vmatpush1.msra.mxu0 0.0
    %90 = vmatprep.subr.mxu0 0.0
    %91 = vmatpush1.msra.mxu0 0.0
    %92 = vmatprep.mubr.f32.mxu0 0.0
    %93 = vmatmul.mubr.f32.gmra.mrb[0].mxu0 %v23
    %v94 = vpop.f32.mrb[0].mxu0
    %v95 = vadd.f32 0.0, %v94
    %v96 = vpop.f32.mrb[0].mxu0
    %97 = vmatprep.mubr.f32.mxu0 0.0
    %98 = vmatmul.mubr.f32.gmra.mrb[0].mxu0 %v26
    %v99 = vpop.f32.mrb[0].mxu0
    %v100 = vadd.f32 0.0, %v99
    %v101 = vpop.f32.mrb[0].mxu0
    %102 = vdwg.mxu0
    %v103 = vld [vmem:[%s2] sm:$0xf]
    %vm104 = vcmask 31744
    %v106 = vsel %vm104, %v95, 0
    %v109 = vsel %vm104, %v100, 0
    %vm111 = vcmask 1043456
    %v113 = vsel %vm111, %v103, 0
    %115 = vmatprep.subr.mxu0 0.0
    %116 = vmatpush1.msra.mxu0 %v113
    %117 = vmatprep.subr.mxu0 0.0
    %118 = vmatpush1.msra.mxu0 0.0
    %119 = vmatprep.subr.mxu0 0.0
    %120 = vmatpush1.msra.mxu0 0.0
    %121 = vmatprep.subr.mxu0 0.0
    %122 = vmatpush1.msra.mxu0 0.0
    %123 = vmatprep.subr.mxu0 0.0
    %124 = vmatpush1.msra.mxu0 0.0
    %125 = vmatprep.subr.mxu0 0.0
    %126 = vmatpush1.msra.mxu0 0.0
    %127 = vmatprep.subr.mxu0 0.0
    %128 = vmatpush1.msra.mxu0 0.0
    %129 = vmatprep.subr.mxu0 0.0
    %130 = vmatpush1.msra.mxu0 0.0
    %131 = vmatprep.subr.mxu0 0.0
    %132 = vmatpush1.msra.mxu0 0.0
    %133 = vmatprep.subr.mxu0 0.0
    %134 = vmatpush1.msra.mxu0 0.0
    %135 = vmatprep.subr.mxu0 0.0
    %136 = vmatpush1.msra.mxu0 0.0
    %137 = vmatprep.subr.mxu0 0.0
    %138 = vmatpush1.msra.mxu0 0.0
    %139 = vmatprep.subr.mxu0 0.0
    %140 = vmatpush1.msra.mxu0 0.0
    %141 = vmatprep.subr.mxu0 0.0
    %142 = vmatpush1.msra.mxu0 0.0
    %143 = vmatprep.subr.mxu0 0.0
    %144 = vmatpush1.msra.mxu0 0.0
    %145 = vmatprep.subr.mxu0 0.0
    %146 = vmatpush1.msra.mxu0 0.0
    %147 = vmatprep.subr.mxu0 0.0
    %148 = vmatpush1.msra.mxu0 0.0
    %149 = vmatprep.subr.mxu0 0.0
    %150 = vmatpush1.msra.mxu0 0.0
    %151 = vmatprep.subr.mxu0 0.0
    %152 = vmatpush1.msra.mxu0 0.0
    %153 = vmatprep.subr.mxu0 0.0
    %154 = vmatpush1.msra.mxu0 0.0
    %155 = vmatprep.subr.mxu0 0.0
    %156 = vmatpush1.msra.mxu0 0.0
    %157 = vmatprep.subr.mxu0 0.0
    %158 = vmatpush1.msra.mxu0 0.0
    %159 = vmatprep.subr.mxu0 0.0
    %160 = vmatpush1.msra.mxu0 0.0
    %161 = vmatprep.subr.mxu0 0.0
    %162 = vmatpush1.msra.mxu0 0.0
    %163 = vmatprep.subr.mxu0 0.0
    %164 = vmatpush1.msra.mxu0 0.0
    %165 = vmatprep.subr.mxu0 0.0
    %166 = vmatpush1.msra.mxu0 0.0
    %167 = vmatprep.subr.mxu0 0.0
    %168 = vmatpush1.msra.mxu0 0.0
    %169 = vmatprep.subr.mxu0 0.0
    %170 = vmatpush1.msra.mxu0 0.0
    %171 = vmatprep.subr.mxu0 0.0
    %172 = vmatpush1.msra.mxu0 0.0
    %173 = vmatprep.subr.mxu0 0.0
    %174 = vmatpush1.msra.mxu0 0.0
    %175 = vmatprep.subr.mxu0 0.0
    %176 = vmatpush1.msra.mxu0 0.0
    %177 = vmatprep.subr.mxu0 0.0
    %178 = vmatpush1.msra.mxu0 0.0
    %179 = vmatprep.mubr.f32.mxu0 0.0
    %180 = vmatmul.mubr.f32.gmra.mrb[0].mxu0 %v106
    %v181 = vpop.f32.mrb[0].mxu0
    %v182 = vadd.f32 0.0, %v181
    %v183 = vpop.f32.mrb[0].mxu0
    %184 = vmatprep.mubr.f32.mxu0 0.0
    %185 = vmatmul.mubr.f32.gmra.mrb[0].mxu0 %v109
    %v186 = vpop.f32.mrb[0].mxu0
    %v187 = vadd.f32 0.0, %v186
    %v188 = vpop.f32.mrb[0].mxu0
    %189 = vdwg.mxu0
    %190 = vst.msk [vmem:[#allocation2] sm:$0xff] %vm21, %v182
    %191 = vst.msk [vmem:[#allocation2 + $0x8] sm:$0xff] %vm21, %v187
    // Predicated region
    $region14: #{tpu_custom_call.1} parent=1 // pred_check
      _
    $region15: #{tpu_custom_call.1} parent=1 // pred_check_branch
      %193 = sbr.rel (0) target = $region17
    $region16: #{tpu_custom_call.1} parent=1 // pred_region
      %s195 = ssub.s32 256, 256
      %196 = vsyncadd [#allocation3], %s195
      %s197 = sshll.u32 [#allocation2], 4
      %s198 = int_to_ptr.vmem [resolvable:$true] %s197
      %203 = dma.vmem_to_hbm [thread:$0]  %s198, 256, %s3, [#allocation3], 128, 128, 8
    $region17: #{tpu_custom_call.1} parent=1 // pred_fallthru
      _
    // Predicated region
    $region18: #{tpu_custom_call.1} parent=1 // pred_check
      _
    $region19: #{tpu_custom_call.1} parent=1 // pred_check_branch
      %205 = sbr.rel (0) target = $region21
    $region20: #{tpu_custom_call.1} parent=1 // pred_region
      %206 = dma.done [#allocation3], 256
    $region21: #{tpu_custom_call.1} parent=1 // pred_fallthru
      _
    %207 = vsyncpa [#allocation3], 1

</llo_original>
